<compile_context>
chip_gen: v7x
topology: tpu7x:2x2x1
jax: 0.10.0
libtpu: 0.0.40
codegen_flags: <defaults>
</compile_context>

<pallas_src>
import functools

import jax
import jax.numpy as jnp
from jax.experimental import pallas as pl
from jax.experimental.pallas import tpu as pltpu

_LANE = 128
_TARGET_BLOCK_BYTES = 2 * 1024 * 1024  # ~2 MiB blocks: well past 85% of HBM roofline


def _fanout_tiles_kernel(x_ref, o_ref, *, copies, tile_feat):
    """Write `copies` back-to-back copies of the (rows, tile_feat) input tile."""
    v = x_ref[...]
    for i in range(copies):                     # static, small; offsets are 128-aligned
        o_ref[:, i * tile_feat:(i + 1) * tile_feat] = v


def _fanout_full_kernel(x_ref, o_ref):
    """Fallback: o_ref is (rows, rep, feat); sublane-broadcast the input."""
    o_ref[...] = jnp.broadcast_to(x_ref[...][:, None, :], o_ref.shape)


def _choose_tiling(rows, feat, rep, itemsize):
    """Pick (copies_per_step, tile_feat) honoring the TPU (8,128) block rule."""
    in_full = rows * feat * itemsize
    if in_full <= _TARGET_BLOCK_BYTES:
        # Small input: keep full feature axis, write several copies per step so
        # the grid collapses to rep // copies (usually 1) steps.
        copies = 1
        for cand in range(1, rep + 1):
            if rep % cand == 0 and rows * cand * feat * itemsize <= _TARGET_BLOCK_BYTES:
                copies = cand
        return copies, feat
    # Large input: one copy per step, tile the feature axis into multiples of
    # 128 lanes sized up to ~_TARGET_BLOCK_BYTES.
    ntiles = feat // _LANE
    tile_feat = _LANE
    for d in range(1, ntiles + 1):
        if ntiles % d == 0 and rows * d * _LANE * itemsize <= _TARGET_BLOCK_BYTES:
            tile_feat = d * _LANE
    return 1, tile_feat


def concatenation(x: jax.Array, scale_ratio: int = 4) -> jax.Array:
    """Pallas equivalent of Concatenation(scale_ratio).forward(x)."""
    rep = scale_ratio ** 2
    nd = x.ndim
    if nd == 3:
        c, h, w = x.shape
        rows, feat = 1, c * h * w
        final_shape = (rep * c, h, w)
    elif nd == 4:
        n, c, h, w = x.shape
        rows, feat = n, c * h * w
        final_shape = (n, rep * c, h, w)
    else:
        raise ValueError(f"Concatenation only supports 3-D or 4-D inputs, got {nd}-D")

    itemsize = x.dtype.itemsize
    x2 = x.reshape(rows, feat)                       # free (contiguous) reshape
    bytes_accessed = int((1 + rep) * rows * feat * itemsize)

    if feat % _LANE == 0:
        # -------- fast, lane-aligned path --------
        copies, tile_feat = _choose_tiling(rows, feat, rep, itemsize)
        grid_j = feat // tile_feat                   # feature tiles (outer)
        grid_g = rep // copies                       # copy groups   (inner)

        in_block = (rows, tile_feat)                 # rows == full dim; tile_feat % 128 == 0
        out_block = (rows, copies * tile_feat)
        in_bytes = rows * tile_feat * itemsize
        out_bytes = rows * copies * tile_feat * itemsize
        vmem_limit = int(min(64 * 1024 * 1024,
                             max(16 * 1024 * 1024,
                                 2 * (in_bytes + out_bytes) + (2 << 20))))

        kernel = functools.partial(_fanout_tiles_kernel,
                                   copies=copies, tile_feat=tile_feat)

        out2 = pl.pallas_call(
            kernel,
            out_shape=jax.ShapeDtypeStruct((rows, rep * feat), x.dtype),
            # Feature tiles outermost: the input block index is constant along
            # the inner copy-group axis, so it is DMA'd only once per tile.
            grid=(grid_j, grid_g),
            in_specs=[pl.BlockSpec(in_block, lambda j, g: (0, j))],
            out_specs=pl.BlockSpec(out_block,
                                   lambda j, g, _J=grid_j: (0, g * _J + j)),
            compiler_params=pltpu.CompilerParams(
                dimension_semantics=("parallel", "parallel"),
                vmem_limit_bytes=vmem_limit,
            ),
            cost_estimate=pl.CostEstimate(
                flops=0, transcendentals=0, bytes_accessed=bytes_accessed),
        )(x2)
    else:
        # -------- fallback: feat not a multiple of 128 --------
        # Full-extent blocks always satisfy the (8,128) rule; single grid step.
        # TODO(synk): very large non-lane-aligned inputs would exceed VMEM here;
        # they would need a padded/retiled layout.
        in_bytes = rows * feat * itemsize
        out_bytes = rep * in_bytes
        vmem_limit = int(min(64 * 1024 * 1024,
                             max(16 * 1024 * 1024,
                                 2 * (in_bytes + out_bytes) + (2 << 20))))
        out2 = pl.pallas_call(
            _fanout_full_kernel,
            out_shape=jax.ShapeDtypeStruct((rows, rep, feat), x.dtype),
            grid=(1,),
            in_specs=[pl.BlockSpec((rows, feat), lambda i: (0, 0))],
            out_specs=pl.BlockSpec((rows, rep, feat), lambda i: (0, 0, 0)),
            compiler_params=pltpu.CompilerParams(
                dimension_semantics=("arbitrary",),
                vmem_limit_bytes=vmem_limit,
            ),
            cost_estimate=pl.CostEstimate(
                flops=0, transcendentals=0, bytes_accessed=bytes_accessed),
        )(x2)

    return out2.reshape(final_shape)                 # free reshape back to NCHW / CHW


if __name__ == "__main__":
    key = jax.random.PRNGKey(0)

    # 4-D NCHW input (batch=2, channels=4, spatial=16x16) -> concat along dim 1.
    x4 = jax.random.normal(key, (2, 4, 16, 16), dtype=jnp.float32)
    y4 = jax.block_until_ready(concatenation(x4, scale_ratio=4))
    ref4 = jnp.concatenate([x4] * 16, axis=1)
    assert y4.shape == (2, 64, 16, 16)
    assert jnp.array_equal(y4, ref4)

    # 3-D input (C=4, H=16, W=16) -> concat along dim 0.
    x3 = jax.random.normal(jax.random.PRNGKey(1), (4, 16, 16), dtype=jnp.float32)
    y3 = jax.block_until_ready(concatenation(x3, scale_ratio=4))
    ref3 = jnp.concatenate([x3] * 16, axis=0)
    assert y3.shape == (64, 16, 16)
    assert jnp.array_equal(y3, ref3)

    # Non-lane-aligned feature size exercises the full-block fallback path.
    x_odd = jax.random.normal(jax.random.PRNGKey(2), (3, 5, 7), dtype=jnp.float32)
    y_odd = jax.block_until_ready(concatenation(x_odd, scale_ratio=2))
    ref_odd = jnp.concatenate([x_odd] * 4, axis=0)
    assert y_odd.shape == (12, 5, 7)
    assert jnp.array_equal(y_odd, ref_odd)

    print("KERNEL_OK")
</pallas_src>

<mosaic_0001>
module attributes {stable_mosaic.version = 11 : i64} {
  func.func @_fanout_tiles_kernel(%arg0: i32, %arg1: i32, %arg2: memref<2x1024xf32, #tpu.memory_space<vmem>>, %arg3: memref<2x16384xf32, #tpu.memory_space<vmem>>) attributes {dimension_semantics = [#tpu.dimension_semantics<parallel>, #tpu.dimension_semantics<parallel>], iteration_bounds = array<i64: 1, 1>, scalar_prefetch = 0 : i64, scratch_operands = 0 : i64, tpu.core_type = #tpu.core_type<tc>, window_params = [{transform_indices = @transform_0, window_bounds = array<i64: 2, 1024>}, {transform_indices = @transform_1, window_bounds = array<i64: 2, 16384>}]} {
    %c0 = arith.constant 0 : index
    %c0_0 = arith.constant 0 : index
    %0 = vector.load %arg2[%c0, %c0_0] : memref<2x1024xf32, #tpu.memory_space<vmem>>, vector<2x1024xf32>
    %c0_1 = arith.constant 0 : index
    %c0_2 = arith.constant 0 : index
    %1 = vector.load %arg3[%c0_1, %c0_2] : memref<2x16384xf32, #tpu.memory_space<vmem>>, vector<2x1024xf32>
    tpu.vector_store %arg3[%c0_1, %c0_2], %0 {strides = array<i32>} : memref<2x16384xf32, #tpu.memory_space<vmem>>, vector<2x1024xf32>,
    %c0_3 = arith.constant 0 : index
    %c1024 = arith.constant 1024 : index
    %2 = vector.load %arg3[%c0_3, %c1024] : memref<2x16384xf32, #tpu.memory_space<vmem>>, vector<2x1024xf32>
    tpu.vector_store %arg3[%c0_3, %c1024], %0 {strides = array<i32>} : memref<2x16384xf32, #tpu.memory_space<vmem>>, vector<2x1024xf32>,
    %c0_4 = arith.constant 0 : index
    %c2048 = arith.constant 2048 : index
    %3 = vector.load %arg3[%c0_4, %c2048] : memref<2x16384xf32, #tpu.memory_space<vmem>>, vector<2x1024xf32>
    tpu.vector_store %arg3[%c0_4, %c2048], %0 {strides = array<i32>} : memref<2x16384xf32, #tpu.memory_space<vmem>>, vector<2x1024xf32>,
    %c0_5 = arith.constant 0 : index
    %c3072 = arith.constant 3072 : index
    %4 = vector.load %arg3[%c0_5, %c3072] : memref<2x16384xf32, #tpu.memory_space<vmem>>, vector<2x1024xf32>
    tpu.vector_store %arg3[%c0_5, %c3072], %0 {strides = array<i32>} : memref<2x16384xf32, #tpu.memory_space<vmem>>, vector<2x1024xf32>,
    %c0_6 = arith.constant 0 : index
    %c4096 = arith.constant 4096 : index
    %5 = vector.load %arg3[%c0_6, %c4096] : memref<2x16384xf32, #tpu.memory_space<vmem>>, vector<2x1024xf32>
    tpu.vector_store %arg3[%c0_6, %c4096], %0 {strides = array<i32>} : memref<2x16384xf32, #tpu.memory_space<vmem>>, vector<2x1024xf32>,
    %c0_7 = arith.constant 0 : index
    %c5120 = arith.constant 5120 : index
    %6 = vector.load %arg3[%c0_7, %c5120] : memref<2x16384xf32, #tpu.memory_space<vmem>>, vector<2x1024xf32>
    tpu.vector_store %arg3[%c0_7, %c5120], %0 {strides = array<i32>} : memref<2x16384xf32, #tpu.memory_space<vmem>>, vector<2x1024xf32>,
    %c0_8 = arith.constant 0 : index
    %c6144 = arith.constant 6144 : index
    %7 = vector.load %arg3[%c0_8, %c6144] : memref<2x16384xf32, #tpu.memory_space<vmem>>, vector<2x1024xf32>
    tpu.vector_store %arg3[%c0_8, %c6144], %0 {strides = array<i32>} : memref<2x16384xf32, #tpu.memory_space<vmem>>, vector<2x1024xf32>,
    %c0_9 = arith.constant 0 : index
    %c7168 = arith.constant 7168 : index
    %8 = vector.load %arg3[%c0_9, %c7168] : memref<2x16384xf32, #tpu.memory_space<vmem>>, vector<2x1024xf32>
    tpu.vector_store %arg3[%c0_9, %c7168], %0 {strides = array<i32>} : memref<2x16384xf32, #tpu.memory_space<vmem>>, vector<2x1024xf32>,
    %c0_10 = arith.constant 0 : index
    %c8192 = arith.constant 8192 : index
    %9 = vector.load %arg3[%c0_10, %c8192] : memref<2x16384xf32, #tpu.memory_space<vmem>>, vector<2x1024xf32>
    tpu.vector_store %arg3[%c0_10, %c8192], %0 {strides = array<i32>} : memref<2x16384xf32, #tpu.memory_space<vmem>>, vector<2x1024xf32>,
    %c0_11 = arith.constant 0 : index
    %c9216 = arith.constant 9216 : index
    %10 = vector.load %arg3[%c0_11, %c9216] : memref<2x16384xf32, #tpu.memory_space<vmem>>, vector<2x1024xf32>
    tpu.vector_store %arg3[%c0_11, %c9216], %0 {strides = array<i32>} : memref<2x16384xf32, #tpu.memory_space<vmem>>, vector<2x1024xf32>,
    %c0_12 = arith.constant 0 : index
    %c10240 = arith.constant 10240 : index
    %11 = vector.load %arg3[%c0_12, %c10240] : memref<2x16384xf32, #tpu.memory_space<vmem>>, vector<2x1024xf32>
    tpu.vector_store %arg3[%c0_12, %c10240], %0 {strides = array<i32>} : memref<2x16384xf32, #tpu.memory_space<vmem>>, vector<2x1024xf32>,
    %c0_13 = arith.constant 0 : index
    %c11264 = arith.constant 11264 : index
    %12 = vector.load %arg3[%c0_13, %c11264] : memref<2x16384xf32, #tpu.memory_space<vmem>>, vector<2x1024xf32>
    tpu.vector_store %arg3[%c0_13, %c11264], %0 {strides = array<i32>} : memref<2x16384xf32, #tpu.memory_space<vmem>>, vector<2x1024xf32>,
    %c0_14 = arith.constant 0 : index
    %c12288 = arith.constant 12288 : index
    %13 = vector.load %arg3[%c0_14, %c12288] : memref<2x16384xf32, #tpu.memory_space<vmem>>, vector<2x1024xf32>
    tpu.vector_store %arg3[%c0_14, %c12288], %0 {strides = array<i32>} : memref<2x16384xf32, #tpu.memory_space<vmem>>, vector<2x1024xf32>,
    %c0_15 = arith.constant 0 : index
    %c13312 = arith.constant 13312 : index
    %14 = vector.load %arg3[%c0_15, %c13312] : memref<2x16384xf32, #tpu.memory_space<vmem>>, vector<2x1024xf32>
    tpu.vector_store %arg3[%c0_15, %c13312], %0 {strides = array<i32>} : memref<2x16384xf32, #tpu.memory_space<vmem>>, vector<2x1024xf32>,
    %c0_16 = arith.constant 0 : index
    %c14336 = arith.constant 14336 : index
    %15 = vector.load %arg3[%c0_16, %c14336] : memref<2x16384xf32, #tpu.memory_space<vmem>>, vector<2x1024xf32>
    tpu.vector_store %arg3[%c0_16, %c14336], %0 {strides = array<i32>} : memref<2x16384xf32, #tpu.memory_space<vmem>>, vector<2x1024xf32>,
    %c0_17 = arith.constant 0 : index
    %c15360 = arith.constant 15360 : index
    %16 = vector.load %arg3[%c0_17, %c15360] : memref<2x16384xf32, #tpu.memory_space<vmem>>, vector<2x1024xf32>
    tpu.vector_store %arg3[%c0_17, %c15360], %0 {strides = array<i32>} : memref<2x16384xf32, #tpu.memory_space<vmem>>, vector<2x1024xf32>,
    return
  }
  func.func @transform_0(%arg0: i32, %arg1: i32) -> (i32, i32) {
    %c0_i32 = arith.constant 0 : i32
    %c0_i32_0 = arith.constant 0 : i32
    return %c0_i32, %arg0 : i32, i32
  }
  func.func @transform_1(%arg0: i32, %arg1: i32) -> (i32, i32) {
    %c1_i32 = arith.constant 1 : i32
    %0 = arith.muli %arg1, %c1_i32 : i32
    %1 = arith.addi %0, %arg0 : i32
    %c0_i32 = arith.constant 0 : i32
    %c0_i32_0 = arith.constant 0 : i32
    return %c0_i32, %1 : i32, i32
  }
}

</mosaic_0001>

<llo_original>
// kernel: tpu_custom_call.1
$region0: #{tpu_custom_call.1}
  #allocation0 [shape = 'u32[]', space=smem, size = 0x4, offset = 0x4, fixed_abs, tag = 'smem constant byte address 0x4 - core index']
  #allocation1 [shape = 'u32[144,128]{1,0:T(1,128)}', space=vmem, size = 0x12000, scoped, tag = 'internal scratch']
  %s0 = inlined_call_operand.hbm [shape: f32[2,1024], index: 0, kind: input, shape index: {}]
  %s1 = inlined_call_operand.hbm [shape: f32[2,16384], index: 1, kind: output, shape index: {}]
  %s2 = sld [smem:[#allocation0]]
  $region18: #{tpu_custom_call.1} parent=0
    _
  %s4 = ssub.s32 1, %s2
  %s5 = scalar_select 0, %s4, %s2
  $region1: #{tpu_custom_call.1} parent=0
    #allocation2 [shape = 'u8[8192]{0}', space=vmem, size = 0x2000, scoped, tag = 'input window, operand 0, single buffered']
    #allocation3 [shape = 's32[1]{0}', space=sflag, size = 0x4, scoped, tag = 'scoped memory for tpu_custom_call.1']
    #allocation4 [shape = 's32[1]{0}', space=sflag, size = 0x4, scoped, tag = 'scoped memory for tpu_custom_call.1']
    #allocation5 [shape = 'u8[131072]{0}', space=vmem, size = 0x20000, scoped, tag = 'output window, operand 0, single buffered']
    %6 = vsyncpa [#allocation3], 0
    %7 = vsyncpa [#allocation4], 0
    // Predicated region
    $region2: #{tpu_custom_call.1} parent=1 // pred_check
      _
    $region3: #{tpu_custom_call.1} parent=1 // pred_check_branch
      %9 = sbr.rel (0) target = $region5
    $region4: #{tpu_custom_call.1} parent=1 // pred_region
      %s11 = ssub.s32 256, 256
      %12 = vsyncadd [#allocation3], %s11
      %s14 = sshll.u32 [#allocation2], 4
      %s15 = int_to_ptr.vmem [resolvable:$true] %s14
      %17 = dma.hbm_to_vmem [thread:$0]  %s0, 256, %s15, [#allocation3]
    $region5: #{tpu_custom_call.1} parent=1 // pred_fallthru
      _
    // Predicated region
    $region6: #{tpu_custom_call.1} parent=1 // pred_check
      _
    $region7: #{tpu_custom_call.1} parent=1 // pred_check_branch
      %19 = sbr.rel (0) target = $region9
    $region8: #{tpu_custom_call.1} parent=1 // pred_region
      %20 = dma.done [#allocation3], 256
    $region9: #{tpu_custom_call.1} parent=1 // pred_fallthru
      _
    %s21 = sadd.s32 0, 0
    %s22 = smul.u32 128, %s21
    %v23 = vld [vmem:[#allocation2] sm:$0xff]
    %v24 = vld [vmem:[#allocation2 + $0x8] sm:$0xff]
    %25 = vst [vmem:[#allocation5] sm:$0xff] %v23
    %26 = vst [vmem:[#allocation5 + $0x8] sm:$0xff] %v24
    %27 = vst [vmem:[#allocation5 + $0x10] sm:$0xff] %v23
    %28 = vst [vmem:[#allocation5 + $0x18] sm:$0xff] %v24
    %29 = vst [vmem:[#allocation5 + $0x20] sm:$0xff] %v23
    %30 = vst [vmem:[#allocation5 + $0x28] sm:$0xff] %v24
    %31 = vst [vmem:[#allocation5 + $0x30] sm:$0xff] %v23
    %32 = vst [vmem:[#allocation5 + $0x38] sm:$0xff] %v24
    %33 = vst [vmem:[#allocation5 + $0x40] sm:$0xff] %v23
    %34 = vst [vmem:[#allocation5 + $0x48] sm:$0xff] %v24
    %35 = vst [vmem:[#allocation5 + $0x50] sm:$0xff] %v23
    %36 = vst [vmem:[#allocation5 + $0x58] sm:$0xff] %v24
    %37 = vst [vmem:[#allocation5 + $0x60] sm:$0xff] %v23
    %38 = vst [vmem:[#allocation5 + $0x68] sm:$0xff] %v24
    %39 = vst [vmem:[#allocation5 + $0x70] sm:$0xff] %v23
    %40 = vst [vmem:[#allocation5 + $0x78] sm:$0xff] %v24
    %41 = vst [vmem:[#allocation5 + $0x80] sm:$0xff] %v23
    %42 = vst [vmem:[#allocation5 + $0x88] sm:$0xff] %v24
    %43 = vst [vmem:[#allocation5 + $0x90] sm:$0xff] %v23
    %44 = vst [vmem:[#allocation5 + $0x98] sm:$0xff] %v24
    %45 = vst [vmem:[#allocation5 + $0xa0] sm:$0xff] %v23
    %46 = vst [vmem:[#allocation5 + $0xa8] sm:$0xff] %v24
    %47 = vst [vmem:[#allocation5 + $0xb0] sm:$0xff] %v23
    %48 = vst [vmem:[#allocation5 + $0xb8] sm:$0xff] %v24
    %49 = vst [vmem:[#allocation5 + $0xc0] sm:$0xff] %v23
    %50 = vst [vmem:[#allocation5 + $0xc8] sm:$0xff] %v24
    %51 = vst [vmem:[#allocation5 + $0xd0] sm:$0xff] %v23
    %52 = vst [vmem:[#allocation5 + $0xd8] sm:$0xff] %v24
    %53 = vst [vmem:[#allocation5 + $0xe0] sm:$0xff] %v23
    %54 = vst [vmem:[#allocation5 + $0xe8] sm:$0xff] %v24
    %55 = vst [vmem:[#allocation5 + $0xf0] sm:$0xff] %v23
    %56 = vst [vmem:[#allocation5 + $0xf8] sm:$0xff] %v24
    // Predicated region
    $region10: #{tpu_custom_call.1} parent=1 // pred_check
      _
    $region11: #{tpu_custom_call.1} parent=1 // pred_check_branch
      %58 = sbr.rel (0) target = $region13
    $region12: #{tpu_custom_call.1} parent=1 // pred_region
      %s59 = sadd.s32 0, 0
      %s60 = smul.u32 128, %s59
      %s62 = ssub.s32 4096, 4096
      %63 = vsyncadd [#allocation4], %s62
      %s64 = smul.addr %s60, 32
      %s65 = scalar_lea.hbm %s1, %s64
      %s67 = sshll.u32 [#allocation5], 4
      %s68 = int_to_ptr.vmem [resolvable:$true] %s67
      %70 = dma.vmem_to_hbm [thread:$0]  %s68, 4096, %s65, [#allocation4]
    $region13: #{tpu_custom_call.1} parent=1 // pred_fallthru
      _
    // Predicated region
    $region14: #{tpu_custom_call.1} parent=1 // pred_check
      _
    $region15: #{tpu_custom_call.1} parent=1 // pred_check_branch
      %72 = sbr.rel (0) target = $region17
    $region16: #{tpu_custom_call.1} parent=1 // pred_region
      %73 = dma.done [#allocation4], 4096
    $region17: #{tpu_custom_call.1} parent=1 // pred_fallthru
      _
    %74 = vsyncpa [#allocation3], 1
    %75 = vsyncpa [#allocation4], 1

</llo_original>
